<compile_context>
chip_gen: v6e
topology: v6e:2x2x1
jax: 0.10.0
libtpu: 0.0.40
codegen_flags: <defaults>
</compile_context>

<pallas_src>
import numpy as np
import jax
import jax.numpy as jnp
from jax.experimental import pallas as pl
from jax.experimental.pallas import tpu as pltpu

_SQRT_2PI = float(np.sqrt(2.0 * np.pi))
_VMEM_LIMIT = 32 * 1024 * 1024


def _round_up(n, m):
    return ((n + m - 1) // m) * m


def _s_tile(a_ref, bT_ref, ni_ref, njT_ref, cr_ref, ccT_ref, wmid):
    """Per-tile s[i,j] = a_i + b_j + wmid * ||c_i - c_j||_2.

    ccT is pre-scaled by -2 in the wrapper, so the MXU matmul directly yields
    -2<c_i,c_j>; the max(., 0) clamp before sqrt matches the reference and guards
    against negative rounding of the norms/cross-term cancellation.
    """
    dot = jnp.dot(cr_ref[...], ccT_ref[...], preferred_element_type=jnp.float32)
    d2 = jnp.maximum(ni_ref[...] + njT_ref[...] + dot, 0.0)
    return a_ref[...] + bT_ref[...] + wmid * jnp.sqrt(d2)


def _minmax_kernel(a_ref, bT_ref, ni_ref, njT_ref, cr_ref, ccT_ref, wmid_ref,
                   smin_ref, smax_ref):
    """Pass 1: per-row-block partial min/max of s (megacore-friendly, no masking)."""
    @pl.when(pl.program_id(1) == 0)
    def _():
        smin_ref[...] = jnp.full(smin_ref.shape, jnp.inf, dtype=smin_ref.dtype)
        smax_ref[...] = jnp.full(smax_ref.shape, -jnp.inf, dtype=smax_ref.dtype)

    s = _s_tile(a_ref, bT_ref, ni_ref, njT_ref, cr_ref, ccT_ref, wmid_ref[0])
    smin_ref[...] = jnp.minimum(smin_ref[...], jnp.min(s))
    smax_ref[...] = jnp.maximum(smax_ref[...], jnp.max(s))


def _make_gbf_kernel(num_heads):
    """Pass 2: recompute s per tile, apply folded multi-head Gaussian basis (no divides)."""

    def kernel(a_ref, bT_ref, ni_ref, njT_ref, cr_ref, ccT_ref, wmid_ref,
               mu_ref, coeff_ref, nhiv_ref, out_ref):
        s = _s_tile(a_ref, bT_ref, ni_ref, njT_ref, cr_ref, ccT_ref, wmid_ref[0])
        acc = jnp.zeros(s.shape, jnp.float32)
        for h in range(num_heads):          # H is small & static -> unrolled
            diff = s - mu_ref[h]
            acc = acc + coeff_ref[h] * jnp.exp(nhiv_ref[h] * (diff * diff))
        out_ref[...] = acc.astype(out_ref.dtype)

    return kernel


def _make_fused_kernel(num_heads):
    """Single-tile fast path: compute s once, min/max + normalize + GBF in one body."""

    def kernel(a_ref, bT_ref, ni_ref, njT_ref, cr_ref, ccT_ref, wmid_ref,
               mu_ref, coeff_ref, nhinv_ref, out_ref):
        s = _s_tile(a_ref, bT_ref, ni_ref, njT_ref, cr_ref, ccT_ref, wmid_ref[0])
        smin = jnp.min(s)
        inv_rng = 1.0 / (jnp.max(s) - smin)      # rng==0 -> inf/NaN, same as reference
        sn = (s - smin) * inv_rng
        acc = jnp.zeros(s.shape, jnp.float32)
        for h in range(num_heads):
            diff = sn - mu_ref[h]
            acc = acc + coeff_ref[h] * jnp.exp(nhinv_ref[h] * (diff * diff))
        out_ref[...] = acc.astype(out_ref.dtype)

    return kernel


def spatial_encoding(x, coords, weights_dist, means, stds):
    """Pallas TPU implementation of SpatialEncoding.forward."""
    N, D = x.shape
    assert coords.shape == (N, 3)
    assert weights_dist.shape == (2 * D + 1,)
    H = int(means.shape[0])
    f32 = jnp.float32

    x = x.astype(f32)
    coords = coords.astype(f32)
    weights_dist = weights_dist.astype(f32)
    means = means.astype(f32)
    stds = stds.astype(f32)

    # ---- Tile selection (lane-dense: last tile dim is a multiple of 128).
    if N <= 512:
        fused = True
        tn = max(128, _round_up(N, 128))      # 128 / 256 / 384 / 512 single tile
        tm = tn
        n_pad_m = n_pad_n = tn
    else:
        fused = False
        tm = 256
        n_pad_m = _round_up(N, tm)
        # use tn=1024 only when it costs no extra column padding, else tn=512
        tn = 1024 if _round_up(N, 512) % 1024 == 0 else 512
        n_pad_n = _round_up(N, tn)
    pad_m = n_pad_m - N
    pad_n = n_pad_n - N

    # ---- O(N*D) prologue in the wrapper: ONE fused (D,2) matvec for the row/col
    # linear terms of concat([x_i, dist_ij, x_j]) @ w, plus coords squared norms.
    w12 = jnp.stack([weights_dist[:D], weights_dist[D + 1:]], axis=1)     # (D, 2)
    ab = jnp.dot(x, w12, preferred_element_type=f32)                      # (N, 2)
    a_col = ab[:, 0:1]                                                    # (N, 1) row term
    b_row = ab[:, 1:2].reshape(1, N)                                      # (1, N) col term
    wmid = weights_dist[D:D + 1]                                          # (1,)
    nrm = jnp.sum(coords * coords, axis=1, keepdims=True)                 # (N, 1)
    nrm_col = nrm                                                         # (N, 1)
    nrm_row = nrm.reshape(1, N)                                           # (1, N)
    coords_row = coords                                                   # (N, 3)
    coords_colT = (-2.0 * coords).T                                       # (3, N), -2 folded in

    # Edge-replication padding: padded s entries duplicate real values, so no
    # in-kernel masking is needed for the min/max and padded output is sliced off.
    if pad_m:
        a_col = jnp.pad(a_col, ((0, pad_m), (0, 0)), mode="edge")
        nrm_col = jnp.pad(nrm_col, ((0, pad_m), (0, 0)), mode="edge")
        coords_row = jnp.pad(coords_row, ((0, pad_m), (0, 0)), mode="edge")
    if pad_n:
        b_row = jnp.pad(b_row, ((0, 0), (0, pad_n)), mode="edge")
        nrm_row = jnp.pad(nrm_row, ((0, 0), (0, pad_n)), mode="edge")
        coords_colT = jnp.pad(coords_colT, ((0, 0), (0, pad_n)), mode="edge")

    smem = pltpu.MemorySpace.SMEM
    shared_in_specs = [
        pl.BlockSpec((tm, 1), lambda i, j: (i, 0)),                  # a_i   (row block)
        pl.BlockSpec((1, tn), lambda i, j: (0, j)),                  # b_j   (col block)
        pl.BlockSpec((tm, 1), lambda i, j: (i, 0)),                  # |c_i|^2
        pl.BlockSpec((1, tn), lambda i, j: (0, j)),                  # |c_j|^2
        pl.BlockSpec((tm, 3), lambda i, j: (i, 0)),                  # c_i
        pl.BlockSpec((3, tn), lambda i, j: (0, j)),                  # -2 * c_j^T
        pl.BlockSpec((1,), lambda i, j: (0,), memory_space=smem),    # w_mid scalar
    ]
    head_spec = pl.BlockSpec((H,), lambda i, j: (0,), memory_space=smem)
    vmem_args = (a_col, b_row, nrm_col, nrm_row, coords_row, coords_colT, wmid)

    grid = (n_pad_m // tm, n_pad_n // tn)

    if fused:
        # ---- Single launch: s computed once; per-head scalars precomputed (rng-free).
        coeff = 1.0 / (H * _SQRT_2PI * stds)       # includes the 1/H of the head mean
        nhinv = -0.5 / jnp.square(stds)
        out_pad = pl.pallas_call(
            _make_fused_kernel(H),
            grid=grid,
            in_specs=shared_in_specs + [head_spec, head_spec, head_spec],
            out_specs=pl.BlockSpec((tm, tn), lambda i, j: (i, j)),
            out_shape=jax.ShapeDtypeStruct((n_pad_m, n_pad_n), f32),
            compiler_params=pltpu.CompilerParams(
                dimension_semantics=("parallel", "parallel"),
                vmem_limit_bytes=_VMEM_LIMIT),
        )(*vmem_args, means, coeff, nhinv)
        return out_pad[:N, :N]

    # ---- Pass 1: per-row-block partial min/max (row axis parallel -> megacore shards).
    grid_m = grid[0]
    smin_p, smax_p = pl.pallas_call(
        _minmax_kernel,
        grid=grid,
        in_specs=shared_in_specs,
        out_specs=(pl.BlockSpec((1, 8, 128), lambda i, j: (i, 0, 0)),
                   pl.BlockSpec((1, 8, 128), lambda i, j: (i, 0, 0))),
        out_shape=(jax.ShapeDtypeStruct((grid_m, 8, 128), f32),
                   jax.ShapeDtypeStruct((grid_m, 8, 128), f32)),
        compiler_params=pltpu.CompilerParams(
            dimension_semantics=("parallel", "arbitrary"),
            vmem_limit_bytes=_VMEM_LIMIT),
    )(*vmem_args)

    smin = jnp.min(smin_p)
    smax = jnp.max(smax_p)
    rng = smax - smin

    # Fold min-max normalization, the 1/H mean and all per-element divides into H scalars:
    #   (s_norm - mu)/sd == (s - mu') / (rng*sd)  with  mu' = smin + mu*rng
    mu_p = smin + means * rng                      # (H,)
    coeff = 1.0 / (H * _SQRT_2PI * stds)           # (H,)
    nhiv = -0.5 / jnp.square(rng * stds)           # (H,) = -0.5 / (rng*sd)^2

    # ---- Pass 2: per-tile Gaussian basis; fully parallel tiles.
    out_pad = pl.pallas_call(
        _make_gbf_kernel(H),
        grid=grid,
        in_specs=shared_in_specs + [head_spec, head_spec, head_spec],
        out_specs=pl.BlockSpec((tm, tn), lambda i, j: (i, j)),
        out_shape=jax.ShapeDtypeStruct((n_pad_m, n_pad_n), f32),
        compiler_params=pltpu.CompilerParams(
            dimension_semantics=("parallel", "parallel"),
            vmem_limit_bytes=_VMEM_LIMIT),
    )(*vmem_args, mu_p, coeff, nhiv)

    return out_pad[:N, :N]


def spatial_encoding_ref(x, coords, weights_dist, means, stds):
    """Pure-JAX reference (mirrors the PyTorch forward) for validation."""
    N, D = x.shape
    norms = jnp.sum(coords ** 2, axis=1, keepdims=True)
    dist = jnp.sqrt(jnp.maximum(norms - 2.0 * coords @ coords.T + norms.T, 0.0))
    concats = jnp.concatenate(
        [jnp.broadcast_to(x[:, None, :], (N, N, D)),
         dist[:, :, None],
         jnp.broadcast_to(x[None, :, :], (N, N, D))], axis=-1)
    s = (concats.reshape(N * N, 2 * D + 1) @ weights_dist).reshape(N, N)
    s = (s - s.min()) / (s.max() - s.min())
    a = np.sqrt(2.0 * np.pi)
    stds_b = stds.reshape(-1, 1, 1)
    means_b = means.reshape(-1, 1, 1)
    g = 1.0 / (a * stds_b) * jnp.exp(-0.5 * (s - means_b) ** 2 / stds_b ** 2)
    return jnp.mean(g, axis=0)


if __name__ == "__main__":
    num_heads = 4
    embedding_size = 32

    key = jax.random.PRNGKey(0)
    k_x, k_c, k_m, k_s, k_w = jax.random.split(key, 5)

    # Deterministic "randn" parameter init (matches nn.Parameter(torch.randn(...)) shapes)
    means = jax.random.normal(k_m, (num_heads,), dtype=jnp.float32)
    stds = jax.random.normal(k_s, (num_heads,), dtype=jnp.float32)
    weights_dist = jax.random.normal(k_w, (2 * embedding_size + 1,), dtype=jnp.float32)

    def _check(n, kx, kc):
        xx = jax.random.normal(kx, (n, embedding_size), dtype=jnp.float32)
        cc = jax.random.normal(kc, (n, 3), dtype=jnp.float32)
        out = spatial_encoding(xx, cc, weights_dist, means, stds)
        jax.block_until_ready(out)
        ref = spatial_encoding_ref(xx, cc, weights_dist, means, stds)
        assert out.shape == (n, n)
        assert jnp.allclose(out, ref, atol=1e-3, rtol=1e-3), f"mismatch vs reference (N={n})"

    # Primary small case: fused single-tile fast path (N=8 -> one 128x128 tile).
    _check(8, k_x, k_c)

    # Fused fast path with edge-replication padding (N=300 -> single 384x384 tile).
    k_x2, k_c2 = jax.random.split(k_x)
    _check(300, k_x2, k_c2)

    # Two-pass tiled path with per-row-block partial min/max
    # (N=600 -> rows padded to 768 (tm=256), cols padded to 1024 (tn=1024), grid (3,1)).
    k_x3, k_c3 = jax.random.split(k_c)
    _check(600, k_x3, k_c3)

    print("KERNEL_OK")
</pallas_src>

<mosaic_0001>
module attributes {stable_mosaic.version = 11 : i64} {
  func.func @kernel(%arg0: i32, %arg1: i32, %arg2: memref<128x1xf32, #tpu.memory_space<vmem>>, %arg3: memref<1x128xf32, #tpu.memory_space<vmem>>, %arg4: memref<128x1xf32, #tpu.memory_space<vmem>>, %arg5: memref<1x128xf32, #tpu.memory_space<vmem>>, %arg6: memref<128x3xf32, #tpu.memory_space<vmem>>, %arg7: memref<3x128xf32, #tpu.memory_space<vmem>>, %arg8: memref<1xf32, #tpu.memory_space<smem>>, %arg9: memref<4xf32, #tpu.memory_space<smem>>, %arg10: memref<4xf32, #tpu.memory_space<smem>>, %arg11: memref<4xf32, #tpu.memory_space<smem>>, %arg12: memref<128x128xf32, #tpu.memory_space<vmem>>) attributes {dimension_semantics = [#tpu.dimension_semantics<parallel>, #tpu.dimension_semantics<parallel>], iteration_bounds = array<i64: 1, 1>, scalar_prefetch = 0 : i64, scratch_operands = 0 : i64, tpu.core_type = #tpu.core_type<tc>, window_params = [{transform_indices = @transform_0, window_bounds = array<i64: 128, 1>}, {transform_indices = @transform_1, window_bounds = array<i64: 1, 128>}, {transform_indices = @transform_2, window_bounds = array<i64: 128, 1>}, {transform_indices = @transform_3, window_bounds = array<i64: 1, 128>}, {transform_indices = @transform_4, window_bounds = array<i64: 128, 3>}, {transform_indices = @transform_5, window_bounds = array<i64: 3, 128>}, {transform_indices = @transform_6, window_bounds = array<i64: 1>}, {transform_indices = @transform_7, window_bounds = array<i64: 4>}, {transform_indices = @transform_8, window_bounds = array<i64: 4>}, {transform_indices = @transform_9, window_bounds = array<i64: 4>}, {transform_indices = @transform_10, window_bounds = array<i64: 128, 128>}]} {
    %c0 = arith.constant 0 : index
    %0 = memref.load %arg8[%c0] : memref<1xf32, #tpu.memory_space<smem>>
    %c0_0 = arith.constant 0 : index
    %c0_1 = arith.constant 0 : index
    %1 = vector.load %arg6[%c0_0, %c0_1] : memref<128x3xf32, #tpu.memory_space<vmem>>, vector<128x3xf32>
    %c0_2 = arith.constant 0 : index
    %c0_3 = arith.constant 0 : index
    %2 = vector.load %arg7[%c0_2, %c0_3] : memref<3x128xf32, #tpu.memory_space<vmem>>, vector<3x128xf32>
    %cst = arith.constant dense<0.000000e+00> : vector<128x128xf32>
    %3 = tpu.matmul %1, %2, %cst {dimension_numbers = #tpu.dot_dimension_numbers<[1], [0], [0], [1], [0, 0, 1, 1], [], []>} : vector<128x3xf32>, vector<3x128xf32>, vector<128x128xf32> -> vector<128x128xf32>
    %c0_4 = arith.constant 0 : index
    %c0_5 = arith.constant 0 : index
    %4 = vector.load %arg4[%c0_4, %c0_5] : memref<128x1xf32, #tpu.memory_space<vmem>>, vector<128x1xf32>
    %c0_6 = arith.constant 0 : index
    %c0_7 = arith.constant 0 : index
    %5 = vector.load %arg5[%c0_6, %c0_7] : memref<1x128xf32, #tpu.memory_space<vmem>>, vector<1x128xf32>
    %6 = vector.broadcast %4 : vector<128x1xf32> to vector<128x128xf32>
    %7 = vector.broadcast %5 : vector<1x128xf32> to vector<128x128xf32>
    %8 = arith.addf %6, %7 : vector<128x128xf32>
    %9 = arith.addf %8, %3 : vector<128x128xf32>
    %cst_8 = arith.constant 0.000000e+00 : f32
    %10 = vector.broadcast %cst_8 : f32 to vector<128x128xf32>
    %11 = arith.maximumf %9, %10 : vector<128x128xf32>
    %c0_9 = arith.constant 0 : index
    %c0_10 = arith.constant 0 : index
    %12 = vector.load %arg2[%c0_9, %c0_10] : memref<128x1xf32, #tpu.memory_space<vmem>>, vector<128x1xf32>
    %c0_11 = arith.constant 0 : index
    %c0_12 = arith.constant 0 : index
    %13 = vector.load %arg3[%c0_11, %c0_12] : memref<1x128xf32, #tpu.memory_space<vmem>>, vector<1x128xf32>
    %14 = vector.broadcast %12 : vector<128x1xf32> to vector<128x128xf32>
    %15 = vector.broadcast %13 : vector<1x128xf32> to vector<128x128xf32>
    %16 = arith.addf %14, %15 : vector<128x128xf32>
    %17 = math.sqrt %11 : vector<128x128xf32>
    %18 = vector.broadcast %0 : f32 to vector<128x128xf32>
    %19 = arith.mulf %18, %17 : vector<128x128xf32>
    %20 = arith.addf %16, %19 : vector<128x128xf32>
    %21 = vector.shape_cast %20 : vector<128x128xf32> to vector<1x128x128xf32>
    %cst_13 = arith.constant dense<0x7F800000> : vector<1xf32>
    %22 = vector.multi_reduction <minimumf>, %21, %cst_13 [1, 2] : vector<1x128x128xf32> to vector<1xf32>
    %23 = vector.shape_cast %22 : vector<1xf32> to vector<1x1x1xf32>
    %24 = vector.extract %23[0, 0, 0] : f32 from vector<1x1x1xf32>
    %25 = vector.shape_cast %20 : vector<128x128xf32> to vector<1x128x128xf32>
    %cst_14 = arith.constant dense<0xFF800000> : vector<1xf32>
    %26 = vector.multi_reduction <maximumf>, %25, %cst_14 [1, 2] : vector<1x128x128xf32> to vector<1xf32>
    %27 = vector.shape_cast %26 : vector<1xf32> to vector<1x1x1xf32>
    %28 = vector.extract %27[0, 0, 0] : f32 from vector<1x1x1xf32>
    %29 = arith.subf %28, %24 : f32
    %cst_15 = arith.constant 1.000000e+00 : f32
    %30 = arith.divf %cst_15, %29 : f32
    %31 = vector.broadcast %24 : f32 to vector<128x128xf32>
    %32 = arith.subf %20, %31 : vector<128x128xf32>
    %33 = vector.broadcast %30 : f32 to vector<128x128xf32>
    %34 = arith.mulf %32, %33 : vector<128x128xf32>
    %cst_16 = arith.constant 0.000000e+00 : f32
    %35 = vector.broadcast %cst_16 : f32 to vector<128x128xf32>
    %c0_17 = arith.constant 0 : index
    %36 = memref.load %arg9[%c0_17] : memref<4xf32, #tpu.memory_space<smem>>
    %37 = vector.broadcast %36 : f32 to vector<128x128xf32>
    %38 = arith.subf %34, %37 : vector<128x128xf32>
    %c0_18 = arith.constant 0 : index
    %39 = memref.load %arg10[%c0_18] : memref<4xf32, #tpu.memory_space<smem>>
    %c0_19 = arith.constant 0 : index
    %40 = memref.load %arg11[%c0_19] : memref<4xf32, #tpu.memory_space<smem>>
    %41 = arith.mulf %38, %38 : vector<128x128xf32>
    %42 = vector.broadcast %40 : f32 to vector<128x128xf32>
    %43 = arith.mulf %42, %41 : vector<128x128xf32>
    %44 = math.exp %43 : vector<128x128xf32>
    %45 = vector.broadcast %39 : f32 to vector<128x128xf32>
    %46 = arith.mulf %45, %44 : vector<128x128xf32>
    %47 = arith.addf %35, %46 : vector<128x128xf32>
    %c1 = arith.constant 1 : index
    %48 = memref.load %arg9[%c1] : memref<4xf32, #tpu.memory_space<smem>>
    %49 = vector.broadcast %48 : f32 to vector<128x128xf32>
    %50 = arith.subf %34, %49 : vector<128x128xf32>
    %c1_20 = arith.constant 1 : index
    %51 = memref.load %arg10[%c1_20] : memref<4xf32, #tpu.memory_space<smem>>
    %c1_21 = arith.constant 1 : index
    %52 = memref.load %arg11[%c1_21] : memref<4xf32, #tpu.memory_space<smem>>
    %53 = arith.mulf %50, %50 : vector<128x128xf32>
    %54 = vector.broadcast %52 : f32 to vector<128x128xf32>
    %55 = arith.mulf %54, %53 : vector<128x128xf32>
    %56 = math.exp %55 : vector<128x128xf32>
    %57 = vector.broadcast %51 : f32 to vector<128x128xf32>
    %58 = arith.mulf %57, %56 : vector<128x128xf32>
    %59 = arith.addf %47, %58 : vector<128x128xf32>
    %c2 = arith.constant 2 : index
    %60 = memref.load %arg9[%c2] : memref<4xf32, #tpu.memory_space<smem>>
    %61 = vector.broadcast %60 : f32 to vector<128x128xf32>
    %62 = arith.subf %34, %61 : vector<128x128xf32>
    %c2_22 = arith.constant 2 : index
    %63 = memref.load %arg10[%c2_22] : memref<4xf32, #tpu.memory_space<smem>>
    %c2_23 = arith.constant 2 : index
    %64 = memref.load %arg11[%c2_23] : memref<4xf32, #tpu.memory_space<smem>>
    %65 = arith.mulf %62, %62 : vector<128x128xf32>
    %66 = vector.broadcast %64 : f32 to vector<128x128xf32>
    %67 = arith.mulf %66, %65 : vector<128x128xf32>
    %68 = math.exp %67 : vector<128x128xf32>
    %69 = vector.broadcast %63 : f32 to vector<128x128xf32>
    %70 = arith.mulf %69, %68 : vector<128x128xf32>
    %71 = arith.addf %59, %70 : vector<128x128xf32>
    %c3 = arith.constant 3 : index
    %72 = memref.load %arg9[%c3] : memref<4xf32, #tpu.memory_space<smem>>
    %73 = vector.broadcast %72 : f32 to vector<128x128xf32>
    %74 = arith.subf %34, %73 : vector<128x128xf32>
    %c3_24 = arith.constant 3 : index
    %75 = memref.load %arg10[%c3_24] : memref<4xf32, #tpu.memory_space<smem>>
    %c3_25 = arith.constant 3 : index
    %76 = memref.load %arg11[%c3_25] : memref<4xf32, #tpu.memory_space<smem>>
    %77 = arith.mulf %74, %74 : vector<128x128xf32>
    %78 = vector.broadcast %76 : f32 to vector<128x128xf32>
    %79 = arith.mulf %78, %77 : vector<128x128xf32>
    %80 = math.exp %79 : vector<128x128xf32>
    %81 = vector.broadcast %75 : f32 to vector<128x128xf32>
    %82 = arith.mulf %81, %80 : vector<128x128xf32>
    %83 = arith.addf %71, %82 : vector<128x128xf32>
    %c0_26 = arith.constant 0 : index
    %c0_27 = arith.constant 0 : index
    %84 = vector.load %arg12[%c0_26, %c0_27] : memref<128x128xf32, #tpu.memory_space<vmem>>, vector<128x128xf32>
    tpu.vector_store %arg12[%c0_26, %c0_27], %83 {strides = array<i32>} : memref<128x128xf32, #tpu.memory_space<vmem>>, vector<128x128xf32>,
    return
  }
  func.func @transform_0(%arg0: i32, %arg1: i32) -> (i32, i32) {
    %c0_i32 = arith.constant 0 : i32
    %c0_i32_0 = arith.constant 0 : i32
    return %arg0, %c0_i32 : i32, i32
  }
  func.func @transform_1(%arg0: i32, %arg1: i32) -> (i32, i32) {
    %c0_i32 = arith.constant 0 : i32
    %c0_i32_0 = arith.constant 0 : i32
    return %c0_i32, %arg1 : i32, i32
  }
  func.func @transform_2(%arg0: i32, %arg1: i32) -> (i32, i32) {
    %c0_i32 = arith.constant 0 : i32
    %c0_i32_0 = arith.constant 0 : i32
    return %arg0, %c0_i32 : i32, i32
  }
  func.func @transform_3(%arg0: i32, %arg1: i32) -> (i32, i32) {
    %c0_i32 = arith.constant 0 : i32
    %c0_i32_0 = arith.constant 0 : i32
    return %c0_i32, %arg1 : i32, i32
  }
  func.func @transform_4(%arg0: i32, %arg1: i32) -> (i32, i32) {
    %c0_i32 = arith.constant 0 : i32
    %c0_i32_0 = arith.constant 0 : i32
    return %arg0, %c0_i32 : i32, i32
  }
  func.func @transform_5(%arg0: i32, %arg1: i32) -> (i32, i32) {
    %c0_i32 = arith.constant 0 : i32
    %c0_i32_0 = arith.constant 0 : i32
    return %c0_i32, %arg1 : i32, i32
  }
  func.func @transform_6(%arg0: i32, %arg1: i32) -> i32 {
    %c0_i32 = arith.constant 0 : i32
    %c0_i32_0 = arith.constant 0 : i32
    return %c0_i32 : i32
  }
  func.func @transform_7(%arg0: i32, %arg1: i32) -> i32 {
    %c0_i32 = arith.constant 0 : i32
    %c0_i32_0 = arith.constant 0 : i32
    return %c0_i32 : i32
  }
  func.func @transform_8(%arg0: i32, %arg1: i32) -> i32 {
    %c0_i32 = arith.constant 0 : i32
    %c0_i32_0 = arith.constant 0 : i32
    return %c0_i32 : i32
  }
  func.func @transform_9(%arg0: i32, %arg1: i32) -> i32 {
    %c0_i32 = arith.constant 0 : i32
    %c0_i32_0 = arith.constant 0 : i32
    return %c0_i32 : i32
  }
  func.func @transform_10(%arg0: i32, %arg1: i32) -> (i32, i32) {
    %c0_i32 = arith.constant 0 : i32
    return %arg0, %arg1 : i32, i32
  }
}

</mosaic_0001>

<llo_original>
// kernel: tpu_custom_call.1
$region0: #{tpu_custom_call.1}
  #allocation0 [shape = 'u32[]', space=smem, size = 0x4, offset = 0x4, fixed_abs, tag = 'smem constant byte address 0x4 - core index']
  #allocation1 [shape = 'u32[144,128]{1,0:T(1,128)}', space=vmem, size = 0x12000, scoped, tag = 'internal scratch']
  #allocation2 [shape = 'f32[1]{0:T(128)S(6)}', space=smem, size = 0x200, scoped, tag = 'scoped memory for tpu_custom_call.1']
  %s0 = inlined_call_operand.vmem [shape: f32[128,1], index: 0, kind: input, shape index: {}]
  %s1 = inlined_call_operand.vmem [shape: f32[1,128], index: 1, kind: input, shape index: {}]
  %s2 = inlined_call_operand.vmem [shape: f32[128,1], index: 2, kind: input, shape index: {}]
  %s3 = inlined_call_operand.vmem [shape: f32[1,128], index: 3, kind: input, shape index: {}]
  %s4 = inlined_call_operand.vmem [shape: f32[128,3], index: 4, kind: input, shape index: {}]
  %s5 = inlined_call_operand.vmem [shape: f32[3,128], index: 5, kind: input, shape index: {}]
  %s6 = inlined_call_operand.<no memory space> [shape: f32[1], index: 6, kind: input, shape index: {}]
  %s7 = inlined_call_operand.vmem [shape: f32[4], index: 7, kind: input, shape index: {}]
  %s8 = inlined_call_operand.vmem [shape: f32[4], index: 8, kind: input, shape index: {}]
  %s9 = inlined_call_operand.vmem [shape: f32[4], index: 9, kind: input, shape index: {}]
  %s10 = inlined_call_operand.hbm [shape: f32[128,128], index: 10, kind: output, shape index: {}]
  %s11 = sld [smem:[#allocation0]]
  $region62: #{tpu_custom_call.1} parent=0
    _
  %s13 = ssub.s32 1, %s11
  %s14 = scalar_select 0, %s13, %s11
  %15 = sst [smem:[#allocation2]] %s6
  $region1: #{tpu_custom_call.1} parent=0
    #allocation3 [shape = 'u8[512]{0}', space=smem, size = 0x200, scoped, tag = 'input window, operand 7, single buffered']
    #allocation4 [shape = 's32[1]{0}', space=sflag, size = 0x4, scoped, tag = 'scoped memory for tpu_custom_call.1']
    #allocation5 [shape = 's32[1]{0}', space=sflag, size = 0x4, scoped, tag = 'scoped memory for tpu_custom_call.1']
    #allocation6 [shape = 'u8[512]{0}', space=smem, size = 0x200, scoped, tag = 'input window, operand 8, single buffered']
    #allocation7 [shape = 's32[1]{0}', space=sflag, size = 0x4, scoped, tag = 'scoped memory for tpu_custom_call.1']
    #allocation8 [shape = 'u8[512]{0}', space=smem, size = 0x200, scoped, tag = 'input window, operand 9, single buffered']
    #allocation9 [shape = 'u8[65536]{0}', space=vmem, size = 0x10000, scoped, tag = 'output window, operand 0, single buffered']
    %16 = vsyncpa [#allocation5], 0
    %17 = vsyncpa [#allocation7], 0
    %18 = vsyncpa [#allocation4], 0
    // Predicated region
    $region2: #{tpu_custom_call.1} parent=1 // pred_check
      _
    $region3: #{tpu_custom_call.1} parent=1 // pred_check_branch
      %20 = sbr.rel (0) target = $region5
    $region4: #{tpu_custom_call.1} parent=1 // pred_region
      _
    $region5: #{tpu_custom_call.1} parent=1 // pred_fallthru
      _
    // Predicated region
    $region6: #{tpu_custom_call.1} parent=1 // pred_check
      _
    $region7: #{tpu_custom_call.1} parent=1 // pred_check_branch
      %22 = sbr.rel (0) target = $region9
    $region8: #{tpu_custom_call.1} parent=1 // pred_region
      _
    $region9: #{tpu_custom_call.1} parent=1 // pred_fallthru
      _
    // Predicated region
    $region10: #{tpu_custom_call.1} parent=1 // pred_check
      _
    $region11: #{tpu_custom_call.1} parent=1 // pred_check_branch
      %24 = sbr.rel (0) target = $region13
    $region12: #{tpu_custom_call.1} parent=1 // pred_region
      _
    $region13: #{tpu_custom_call.1} parent=1 // pred_fallthru
      _
    // Predicated region
    $region14: #{tpu_custom_call.1} parent=1 // pred_check
      _
    $region15: #{tpu_custom_call.1} parent=1 // pred_check_branch
      %26 = sbr.rel (0) target = $region17
    $region16: #{tpu_custom_call.1} parent=1 // pred_region
      _
    $region17: #{tpu_custom_call.1} parent=1 // pred_fallthru
      _
    // Predicated region
    $region18: #{tpu_custom_call.1} parent=1 // pred_check
      _
    $region19: #{tpu_custom_call.1} parent=1 // pred_check_branch
      %28 = sbr.rel (0) target = $region21
    $region20: #{tpu_custom_call.1} parent=1 // pred_region
      _
    $region21: #{tpu_custom_call.1} parent=1 // pred_fallthru
      _
    // Predicated region
    $region22: #{tpu_custom_call.1} parent=1 // pred_check
      _
    $region23: #{tpu_custom_call.1} parent=1 // pred_check_branch
      %30 = sbr.rel (0) target = $region25
    $region24: #{tpu_custom_call.1} parent=1 // pred_region
      _
    $region25: #{tpu_custom_call.1} parent=1 // pred_fallthru
      _
    // Predicated region
    $region26: #{tpu_custom_call.1} parent=1 // pred_check
      _
    $region27: #{tpu_custom_call.1} parent=1 // pred_check_branch
      %32 = sbr.rel (0) target = $region29
    $region28: #{tpu_custom_call.1} parent=1 // pred_region
      _
    $region29: #{tpu_custom_call.1} parent=1 // pred_fallthru
      _
    // Predicated region
    $region30: #{tpu_custom_call.1} parent=1 // pred_check
      _
    $region31: #{tpu_custom_call.1} parent=1 // pred_check_branch
      %34 = sbr.rel (0) target = $region33
    $region32: #{tpu_custom_call.1} parent=1 // pred_region
      %s36 = ssub.s32 16, 16
      %37 = vsyncadd [#allocation5], %s36
      %s39 = sshll.u32 %s7, 4
      %s40 = int_to_ptr.vmem [resolvable:$true] %s39
      %42 = dma.vmem_to_smem %s40, 16, [#allocation3], [#allocation5]
    $region33: #{tpu_custom_call.1} parent=1 // pred_fallthru
      _
    // Predicated region
    $region34: #{tpu_custom_call.1} parent=1 // pred_check
      _
    $region35: #{tpu_custom_call.1} parent=1 // pred_check_branch
      %44 = sbr.rel (0) target = $region37
    $region36: #{tpu_custom_call.1} parent=1 // pred_region
      %s46 = ssub.s32 16, 16
      %47 = vsyncadd [#allocation7], %s46
      %s49 = sshll.u32 %s8, 4
      %s50 = int_to_ptr.vmem [resolvable:$true] %s49
      %52 = dma.vmem_to_smem %s50, 16, [#allocation6], [#allocation7]
    $region37: #{tpu_custom_call.1} parent=1 // pred_fallthru
      _
    // Predicated region
    $region38: #{tpu_custom_call.1} parent=1 // pred_check
      _
    $region39: #{tpu_custom_call.1} parent=1 // pred_check_branch
      %54 = sbr.rel (0) target = $region41
    $region40: #{tpu_custom_call.1} parent=1 // pred_region
      %s56 = ssub.s32 16, 16
      %57 = vsyncadd [#allocation7], %s56
      %s59 = sshll.u32 %s9, 4
      %s60 = int_to_ptr.vmem [resolvable:$true] %s59
      %62 = dma.vmem_to_smem %s60, 16, [#allocation8], [#allocation7]
    $region41: #{tpu_custom_call.1} parent=1 // pred_fallthru
      _
    // Predicated region
    $region42: #{tpu_custom_call.1} parent=1 // pred_check
      _
    $region43: #{tpu_custom_call.1} parent=1 // pred_check_branch
      %64 = sbr.rel (0) target = $region45
    $region44: #{tpu_custom_call.1} parent=1 // pred_region
      %65 = dma.done [#allocation5], 16
    $region45: #{tpu_custom_call.1} parent=1 // pred_fallthru
      _
    // Predicated region
    $region46: #{tpu_custom_call.1} parent=1 // pred_check
      _
    $region47: #{tpu_custom_call.1} parent=1 // pred_check_branch
      %67 = sbr.rel (0) target = $region49
    $region48: #{tpu_custom_call.1} parent=1 // pred_region
      %68 = dma.done [#allocation7], 16
    $region49: #{tpu_custom_call.1} parent=1 // pred_fallthru
      _
    // Predicated region
    $region50: #{tpu_custom_call.1} parent=1 // pred_check
      _
    $region51: #{tpu_custom_call.1} parent=1 // pred_check_branch
      %70 = sbr.rel (0) target = $region53
    $region52: #{tpu_custom_call.1} parent=1 // pred_region
      %71 = dma.done [#allocation7], 16
    $region53: #{tpu_custom_call.1} parent=1 // pred_fallthru
      _
    %72 = sfence
    %s73 = sld [smem:[#allocation2]]
    %v74 = vld [vmem:[%s4] sm:$0xff]
    %v75 = vld [vmem:[%s4 + $0x8] sm:$0xff]
    %v76 = vld [vmem:[%s4 + $0x10] sm:$0xff]
    %v77 = vld [vmem:[%s4 + $0x18] sm:$0xff]
    %v78 = vld [vmem:[%s4 + $0x20] sm:$0xff]
    %v79 = vld [vmem:[%s4 + $0x28] sm:$0xff]
    %v80 = vld [vmem:[%s4 + $0x30] sm:$0xff]
    %v81 = vld [vmem:[%s4 + $0x38] sm:$0xff]
    %v82 = vld [vmem:[%s4 + $0x40] sm:$0xff]
    %v83 = vld [vmem:[%s4 + $0x48] sm:$0xff]
    %v84 = vld [vmem:[%s4 + $0x50] sm:$0xff]
    %v85 = vld [vmem:[%s4 + $0x58] sm:$0xff]
    %v86 = vld [vmem:[%s4 + $0x60] sm:$0xff]
    %v87 = vld [vmem:[%s4 + $0x68] sm:$0xff]
    %v88 = vld [vmem:[%s4 + $0x70] sm:$0xff]
    %v89 = vld [vmem:[%s4 + $0x78] sm:$0xff]
    %v90 = vld [vmem:[%s5] sm:$0x7]
    %vm91 = vcmask 23552
    %v93 = vsel %vm91, %v74, 0
    %v96 = vsel %vm91, %v75, 0
    %v99 = vsel %vm91, %v76, 0
    %v102 = vsel %vm91, %v77, 0
    %v105 = vsel %vm91, %v78, 0
    %v108 = vsel %vm91, %v79, 0
    %v111 = vsel %vm91, %v80, 0
    %v114 = vsel %vm91, %v81, 0
    %v117 = vsel %vm91, %v82, 0
    %v120 = vsel %vm91, %v83, 0
    %v123 = vsel %vm91, %v84, 0
    %v126 = vsel %vm91, %v85, 0
    %v129 = vsel %vm91, %v86, 0
    %v132 = vsel %vm91, %v87, 0
    %v135 = vsel %vm91, %v88, 0
    %v138 = vsel %vm91, %v89, 0
    %vm140 = vcmask 1042432
    %v142 = vsel %vm140, %v90, 0
    %144 = vmatprep.subr.mxu0 0.0
    %145 = vmatpush1.msra.mxu0 0.0
    %146 = vmatprep.subr.mxu0 0.0
    %147 = vmatpush1.msra.mxu0 0.0
    %148 = vmatprep.subr.mxu0 0.0
    %149 = vmatpush1.msra.mxu0 0.0
    %150 = vmatprep.subr.mxu0 0.0
    %151 = vmatpush1.msra.mxu0 0.0
    %152 = vmatprep.subr.mxu0 0.0
    %153 = vmatpush1.msra.mxu0 0.0
    %154 = vmatprep.subr.mxu0 0.0
    %155 = vmatpush1.msra.mxu0 0.0
    %156 = vmatprep.subr.mxu0 0.0
    %157 = vmatpush1.msra.mxu0 0.0
    %158 = vmatprep.subr.mxu0 0.0
    %159 = vmatpush1.msra.mxu0 0.0
    %160 = vmatprep.subr.mxu0 0.0
    %161 = vmatpush1.msra.mxu0 0.0
    %162 = vmatprep.subr.mxu0 0.0
    %163 = vmatpush1.msra.mxu0 0.0
    %164 = vmatprep.subr.mxu0 0.0
    %165 = vmatpush1.msra.mxu0 0.0
    %166 = vmatprep.subr.mxu0 0.0
    %167 = vmatpush1.msra.mxu0 0.0
    %168 = vmatprep.subr.mxu0 0.0
    %169 = vmatpush1.msra.mxu0 0.0
    %170 = vmatprep.subr.mxu0 0.0
    %171 = vmatpush1.msra.mxu0 0.0
    %172 = vmatprep.subr.mxu0 0.0
    %173 = vmatpush1.msra.mxu0 0.0
    %174 = vmatprep.subr.mxu0 0.0
    %175 = vmatpush1.msra.mxu0 %v142
    %176 = vmatprep.subr.mxu0 0.0
    %177 = vmatpush2.msra.mxu0 0.0
    %178 = vmatprep.subr.mxu0 0.0
    %179 = vmatpush2.msra.mxu0 0.0
    %180 = vmatprep.subr.mxu0 0.0
    %181 = vmatpush2.msra.mxu0 0.0
    %182 = vmatprep.subr.mxu0 0.0
    %183 = vmatpush2.msra.mxu0 0.0
    %184 = vmatprep.subr.mxu0 0.0
    %185 = vmatpush2.msra.mxu0 0.0
    %186 = vmatprep.subr.mxu0 0.0
    %187 = vmatpush2.msra.mxu0 0.0
    %188 = vmatprep.subr.mxu0 0.0
    %189 = vmatpush2.msra.mxu0 0.0
    %190 = vmatprep.subr.mxu0 0.0
    %191 = vmatpush2.msra.mxu0 0.0
    %192 = vmatprep.subr.mxu0 0.0
    %193 = vmatpush2.msra.mxu0 0.0
    %194 = vmatprep.subr.mxu0 0.0
    %195 = vmatpush2.msra.mxu0 0.0
    %196 = vmatprep.subr.mxu0 0.0
    %197 = vmatpush2.msra.mxu0 0.0
    %198 = vmatprep.subr.mxu0 0.0
    %199 = vmatpush2.msra.mxu0 0.0
    %200 = vmatprep.subr.mxu0 0.0
    %201 = vmatpush2.msra.mxu0 0.0
    %202 = vmatprep.subr.mxu0 0.0
    %203 = vmatpush2.msra.mxu0 0.0
    %204 = vmatprep.subr.mxu0 0.0
    %205 = vmatpush2.msra.mxu0 0.0
    %206 = vmatprep.subr.mxu0 0.0
    %207 = vmatpush2.msra.mxu0 0.0
    %208 = vmatprep.mubr.f32.mxu0 0.0
    %209 = vmatmul.mubr.f32.gmra.mxu0 %v93
    %v210 = vpop.f32.mrf.mxu0
    %v211 = vadd.f32 0.0, %v210
    %v212 = vpop.f32.mrf.mxu0
    %213 = vmatprep.mubr.f32.mxu0 0.0
    %214 = vmatmul.mubr.f32.gmra.mxu0 %v96
    %v215 = vpop.f32.mrf.mxu0
    %v216 = vadd.f32 0.0, %v215
    %v217 = vpop.f32.mrf.mxu0
    %218 = vmatprep.mubr.f32.mxu0 0.0
    %219 = vmatmul.mubr.f32.gmra.mxu0 %v99
    %v220 = vpop.f32.mrf.mxu0
    %v221 = vadd.f32 0.0, %v220
    %v222 = vpop.f32.mrf.mxu0
    %223 = vmatprep.mubr.f32.mxu0 0.0
    %224 = vmatmul.mubr.f32.gmra.mxu0 %v102
    %v225 = vpop.f32.mrf.mxu0
    %v226 = vadd.f32 0.0, %v225
    %v227 = vpop.f32.mrf.mxu0
    %228 = vmatprep.mubr.f32.mxu0 0.0
    %229 = vmatmul.mubr.f32.gmra.mxu0 %v105
    %v230 = vpop.f32.mrf.mxu0
    %v231 = vadd.f32 0.0, %v230
    %v232 = vpop.f32.mrf.mxu0
    %233 = vmatprep.mubr.f32.mxu0 0.0
    %234 = vmatmul.mubr.f32.gmra.mxu0 %v108
    %v235 = vpop.f32.mrf.mxu0
    %v236 = vadd.f32 0.0, %v235
    %v237 = vpop.f32.mrf.mxu0
    %238 = vmatprep.mubr.f32.mxu0 0.0
    %239 = vmatmul.mubr.f32.gmra.mxu0 %v111
    %v240 = vpop.f32.mrf.mxu0
    %v241 = vadd.f32 0.0, %v240
    %v242 = vpop.f32.mrf.mxu0
    %243 = vmatprep.mubr.f32.mxu0 0.0
    %244 = vmatmul.mubr.f32.gmra.mxu0 %v114
    %v245 = vpop.f32.mrf.mxu0
    %v246 = vadd.f32 0.0, %v245
    %v247 = vpop.f32.mrf.mxu0
    %248 = vmatprep.mubr.f32.mxu0 0.0
    %249 = vmatmul.mubr.f32.gmra.mxu0 %v117
    %v250 = vpop.f32.mrf.mxu0
    %v251 = vadd.f32 0.0, %v250
    %v252 = vpop.f32.mrf.mxu0
    %253 = vmatprep.mubr.f32.mxu0 0.0
    %254 = vmatmul.mubr.f32.gmra.mxu0 %v120
    %v255 = vpop.f32.mrf.mxu0
    %v256 = vadd.f32 0.0, %v255
    %v257 = vpop.f32.mrf.mxu0
    %258 = vmatprep.mubr.f32.mxu0 0.0
    %259 = vmatmul.mubr.f32.gmra.mxu0 %v123
    %v260 = vpop.f32.mrf.mxu0
    %v261 = vadd.f32 0.0, %v260
    %v262 = vpop.f32.mrf.mxu0
    %263 = vmatprep.mubr.f32.mxu0 0.0
    %264 = vmatmul.mubr.f32.gmra.mxu0 %v126
    %v265 = vpop.f32.mrf.mxu0
    %v266 = vadd.f32 0.0, %v265
    %v267 = vpop.f32.mrf.mxu0
    %268 = vmatprep.mubr.f32.mxu0 0.0
    %269 = vmatmul.mubr.f32.gmra.mxu0 %v129
    %v270 = vpop.f32.mrf.mxu0
    %v271 = vadd.f32 0.0, %v270
    %v272 = vpop.f32.mrf.mxu0
    %273 = vmatprep.mubr.f32.mxu0 0.0
    %274 = vmatmul.mubr.f32.gmra.mxu0 %v132
    %v275 = vpop.f32.mrf.mxu0
    %v276 = vadd.f32 0.0, %v275
    %v277 = vpop.f32.mrf.mxu0
    %278 = vmatprep.mubr.f32.mxu0 0.0
    %279 = vmatmul.mubr.f32.gmra.mxu0 %v135
    %v280 = vpop.f32.mrf.mxu0
    %v281 = vadd.f32 0.0, %v280
    %v282 = vpop.f32.mrf.mxu0
    %283 = vmatprep.mubr.f32.mxu0 0.0
    %284 = vmatmul.mubr.f32.gmra.mxu0 %v138
    %v285 = vpop.f32.mrf.mxu0
    %v286 = vadd.f32 0.0, %v285
    %v287 = vpop.f32.mrf.mxu0
    %288 = vdwg.mxu0
    %v289 = vld [vmem:[%s2] sm:$0xff]
    %v290 = vld [vmem:[%s2 + $0x8] sm:$0xff]
    %v291 = vld [vmem:[%s2 + $0x10] sm:$0xff]
    %v292 = vld [vmem:[%s2 + $0x18] sm:$0xff]
    %v293 = vld [vmem:[%s2 + $0x20] sm:$0xff]
    %v294 = vld [vmem:[%s2 + $0x28] sm:$0xff]
    %v295 = vld [vmem:[%s2 + $0x30] sm:$0xff]
    %v296 = vld [vmem:[%s2 + $0x38] sm:$0xff]
    %v297 = vld [vmem:[%s2 + $0x40] sm:$0xff]
    %v298 = vld [vmem:[%s2 + $0x48] sm:$0xff]
    %v299 = vld [vmem:[%s2 + $0x50] sm:$0xff]
    %v300 = vld [vmem:[%s2 + $0x58] sm:$0xff]
    %v301 = vld [vmem:[%s2 + $0x60] sm:$0xff]
    %v302 = vld [vmem:[%s2 + $0x68] sm:$0xff]
    %v303 = vld [vmem:[%s2 + $0x70] sm:$0xff]
    %v304 = vld [vmem:[%s2 + $0x78] sm:$0xff]
    %v305 = vld [vmem:[%s3] sm:$0x1]
    %307 = vset.pattern.permute.xlu0 0
    %308 = vperm.xlu0 %307, %v289
    %v309 = vpop.permute.xlu0 %308
    %312 = vset.pattern.permute.xlu0 0
    %313 = vperm.xlu0 %312, %v290
    %v314 = vpop.permute.xlu0 %313
    %317 = vset.pattern.permute.xlu0 0
    %318 = vperm.xlu0 %317, %v291
    %v319 = vpop.permute.xlu0 %318
    %322 = vset.pattern.permute.xlu0 0
    %323 = vperm.xlu0 %322, %v292
    %v324 = vpop.permute.xlu0 %323
    %327 = vset.pattern.permute.xlu0 0
    %328 = vperm.xlu0 %327, %v293
    %v329 = vpop.permute.xlu0 %328
    %332 = vset.pattern.permute.xlu0 0
    %333 = vperm.xlu0 %332, %v294
    %v334 = vpop.permute.xlu0 %333
    %337 = vset.pattern.permute.xlu0 0
    %338 = vperm.xlu0 %337, %v295
    %v339 = vpop.permute.xlu0 %338
    %342 = vset.pattern.permute.xlu0 0
    %343 = vperm.xlu0 %342, %v296
    %v344 = vpop.permute.xlu0 %343
    %347 = vset.pattern.permute.xlu0 0
    %348 = vperm.xlu0 %347, %v297
    %v349 = vpop.permute.xlu0 %348
    %352 = vset.pattern.permute.xlu0 0
    %353 = vperm.xlu0 %352, %v298
    %v354 = vpop.permute.xlu0 %353
    %357 = vset.pattern.permute.xlu0 0
    %358 = vperm.xlu0 %357, %v299
    %v359 = vpop.permute.xlu0 %358
    %362 = vset.pattern.permute.xlu0 0
    %363 = vperm.xlu0 %362, %v300
    %v364 = vpop.permute.xlu0 %363
    %367 = vset.pattern.permute.xlu0 0
    %368 = vperm.xlu0 %367, %v301
    %v369 = vpop.permute.xlu0 %368
    %372 = vset.pattern.permute.xlu0 0
    %373 = vperm.xlu0 %372, %v302
    %v374 = vpop.permute.xlu0 %373
    %377 = vset.pattern.permute.xlu0 0
    %378 = vperm.xlu0 %377, %v303
    %v379 = vpop.permute.xlu0 %378
    %382 = vset.pattern.permute.xlu0 0
    %383 = vperm.xlu0 %382, %v304
    %v384 = vpop.permute.xlu0 %383
    %v387 = vlaneseq
    %v388 = vshrl.u32 %v387, 7
    %v389 = vsub.s32 0, %v388
    %v390 = vrot.slane %v305, %v389
    %v392 = vadd.f32 %v309, %v390
    %v393 = vadd.f32 %v314, %v390
    %v394 = vadd.f32 %v319, %v390
    %v395 = vadd.f32 %v324, %v390
    %v396 = vadd.f32 %v329, %v390
    %v397 = vadd.f32 %v334, %v390
    %v398 = vadd.f32 %v339, %v390
    %v399 = vadd.f32 %v344, %v390
    %v400 = vadd.f32 %v349, %v390
    %v401 = vadd.f32 %v354, %v390
    %v402 = vadd.f32 %v359, %v390
    %v403 = vadd.f32 %v364, %v390
    %v404 = vadd.f32 %v369, %v390
    %v405 = vadd.f32 %v374, %v390
    %v406 = vadd.f32 %v379, %v390
    %v407 = vadd.f32 %v384, %v390
    %v408 = vadd.f32 %v392, %v211
    %v409 = vadd.f32 %v393, %v216
    %v410 = vadd.f32 %v394, %v221
    %v411 = vadd.f32 %v395, %v226
    %v412 = vadd.f32 %v396, %v231
    %v413 = vadd.f32 %v397, %v236
    %v414 = vadd.f32 %v398, %v241
    %v415 = vadd.f32 %v399, %v246
    %v416 = vadd.f32 %v400, %v251
    %v417 = vadd.f32 %v401, %v256
    %v418 = vadd.f32 %v402, %v261
    %v419 = vadd.f32 %v403, %v266
    %v420 = vadd.f32 %v404, %v271
    %v421 = vadd.f32 %v405, %v276
    %v422 = vadd.f32 %v406, %v281
    %v423 = vadd.f32 %v407, %v286
    %v424 = vmax.f32 %v408, 0.0
    %v425 = vmax.f32 %v409, 0.0
    %v426 = vmax.f32 %v410, 0.0
    %v427 = vmax.f32 %v411, 0.0
    %v428 = vmax.f32 %v412, 0.0
    %v429 = vmax.f32 %v413, 0.0
    %v430 = vmax.f32 %v414, 0.0
    %v431 = vmax.f32 %v415, 0.0
    %v432 = vmax.f32 %v416, 0.0
    %v433 = vmax.f32 %v417, 0.0
    %v434 = vmax.f32 %v418, 0.0
    %v435 = vmax.f32 %v419, 0.0
    %v436 = vmax.f32 %v420, 0.0
    %v437 = vmax.f32 %v421, 0.0
    %v438 = vmax.f32 %v422, 0.0
    %v439 = vmax.f32 %v423, 0.0
    %v440 = vld [vmem:[%s0] sm:$0xff]
    %v441 = vld [vmem:[%s0 + $0x8] sm:$0xff]
    %v442 = vld [vmem:[%s0 + $0x10] sm:$0xff]
    %v443 = vld [vmem:[%s0 + $0x18] sm:$0xff]
    %v444 = vld [vmem:[%s0 + $0x20] sm:$0xff]
    %v445 = vld [vmem:[%s0 + $0x28] sm:$0xff]
    %v446 = vld [vmem:[%s0 + $0x30] sm:$0xff]
    %v447 = vld [vmem:[%s0 + $0x38] sm:$0xff]
    %v448 = vld [vmem:[%s0 + $0x40] sm:$0xff]
    %v449 = vld [vmem:[%s0 + $0x48] sm:$0xff]
    %v450 = vld [vmem:[%s0 + $0x50] sm:$0xff]
    %v451 = vld [vmem:[%s0 + $0x58] sm:$0xff]
    %v452 = vld [vmem:[%s0 + $0x60] sm:$0xff]
    %v453 = vld [vmem:[%s0 + $0x68] sm:$0xff]
    %v454 = vld [vmem:[%s0 + $0x70] sm:$0xff]
    %v455 = vld [vmem:[%s0 + $0x78] sm:$0xff]
    %v456 = vld [vmem:[%s1] sm:$0x1]
    %458 = vset.pattern.permute.xlu0 0
    %459 = vperm.xlu0 %458, %v440
    %v460 = vpop.permute.xlu0 %459
    %463 = vset.pattern.permute.xlu0 0
    %464 = vperm.xlu0 %463, %v441
    %v465 = vpop.permute.xlu0 %464
    %468 = vset.pattern.permute.xlu0 0
    %469 = vperm.xlu0 %468, %v442
    %v470 = vpop.permute.xlu0 %469
    %473 = vset.pattern.permute.xlu0 0
    %474 = vperm.xlu0 %473, %v443
    %v475 = vpop.permute.xlu0 %474
    %478 = vset.pattern.permute.xlu0 0
    %479 = vperm.xlu0 %478, %v444
    %v480 = vpop.permute.xlu0 %479
    %483 = vset.pattern.permute.xlu0 0
    %484 = vperm.xlu0 %483, %v445
    %v485 = vpop.permute.xlu0 %484
    %488 = vset.pattern.permute.xlu0 0
    %489 = vperm.xlu0 %488, %v446
    %v490 = vpop.permute.xlu0 %489
    %493 = vset.pattern.permute.xlu0 0
    %494 = vperm.xlu0 %493, %v447
    %v495 = vpop.permute.xlu0 %494
    %498 = vset.pattern.permute.xlu0 0
    %499 = vperm.xlu0 %498, %v448
    %v500 = vpop.permute.xlu0 %499
    %503 = vset.pattern.permute.xlu0 0
    %504 = vperm.xlu0 %503, %v449
    %v505 = vpop.permute.xlu0 %504
    %508 = vset.pattern.permute.xlu0 0
    %509 = vperm.xlu0 %508, %v450
    %v510 = vpop.permute.xlu0 %509
    %513 = vset.pattern.permute.xlu0 0
    %514 = vperm.xlu0 %513, %v451
    %v515 = vpop.permute.xlu0 %514
    %518 = vset.pattern.permute.xlu0 0
    %519 = vperm.xlu0 %518, %v452
    %v520 = vpop.permute.xlu0 %519
    %523 = vset.pattern.permute.xlu0 0
    %524 = vperm.xlu0 %523, %v453
    %v525 = vpop.permute.xlu0 %524
    %528 = vset.pattern.permute.xlu0 0
    %529 = vperm.xlu0 %528, %v454
    %v530 = vpop.permute.xlu0 %529
    %533 = vset.pattern.permute.xlu0 0
    %534 = vperm.xlu0 %533, %v455
    %v535 = vpop.permute.xlu0 %534
    %v538 = vlaneseq
    %v539 = vshrl.u32 %v538, 7
    %v540 = vsub.s32 0, %v539
    %v541 = vrot.slane %v456, %v540
    %v543 = vadd.f32 %v460, %v541
    %v544 = vadd.f32 %v465, %v541
    %v545 = vadd.f32 %v470, %v541
    %v546 = vadd.f32 %v475, %v541
    %v547 = vadd.f32 %v480, %v541
    %v548 = vadd.f32 %v485, %v541
    %v549 = vadd.f32 %v490, %v541
    %v550 = vadd.f32 %v495, %v541
    %v551 = vadd.f32 %v500, %v541
    %v552 = vadd.f32 %v505, %v541
    %v553 = vadd.f32 %v510, %v541
    %v554 = vadd.f32 %v515, %v541
    %v555 = vadd.f32 %v520, %v541
    %v556 = vadd.f32 %v525, %v541
    %v557 = vadd.f32 %v530, %v541
    %v558 = vadd.f32 %v535, %v541
    %v559 = vrsqrt.pop %v424
    %v560 = vmul.f32 %v424, %v559
    %vm561 = vcmp.eq.f32.partialorder %v424, inf
    %v562 = vsel %vm561, %v424, %v560
    %vm563 = vcmp.eq.f32.partialorder %v424, 0.0
    %v564 = vand.u32 %v424, 2147483648
    %v565 = vsel %vm563, %v564, %v562
    %v566 = vrsqrt.pop %v425
    %v567 = vmul.f32 %v425, %v566
    %vm568 = vcmp.eq.f32.partialorder %v425, inf
    %v569 = vsel %vm568, %v425, %v567
    %vm570 = vcmp.eq.f32.partialorder %v425, 0.0
    %v571 = vand.u32 %v425, 2147483648
    %v572 = vsel %vm570, %v571, %v569
    %v573 = vrsqrt.pop %v426
    %v574 = vmul.f32 %v426, %v573
    %vm575 = vcmp.eq.f32.partialorder %v426, inf
    %v576 = vsel %vm575, %v426, %v574
    %vm577 = vcmp.eq.f32.partialorder %v426, 0.0
    %v578 = vand.u32 %v426, 2147483648
    %v579 = vsel %vm577, %v578, %v576
    %v580 = vrsqrt.pop %v427
    %v581 = vmul.f32 %v427, %v580
    %vm582 = vcmp.eq.f32.partialorder %v427, inf
    %v583 = vsel %vm582, %v427, %v581
    %vm584 = vcmp.eq.f32.partialorder %v427, 0.0
    %v585 = vand.u32 %v427, 2147483648
    %v586 = vsel %vm584, %v585, %v583
    %v587 = vrsqrt.pop %v428
    %v588 = vmul.f32 %v428, %v587
    %vm589 = vcmp.eq.f32.partialorder %v428, inf
    %v590 = vsel %vm589, %v428, %v588
    %vm591 = vcmp.eq.f32.partialorder %v428, 0.0
    %v592 = vand.u32 %v428, 2147483648
    %v593 = vsel %vm591, %v592, %v590
    %v594 = vrsqrt.pop %v429
    %v595 = vmul.f32 %v429, %v594
    %vm596 = vcmp.eq.f32.partialorder %v429, inf
    %v597 = vsel %vm596, %v429, %v595
    %vm598 = vcmp.eq.f32.partialorder %v429, 0.0
    %v599 = vand.u32 %v429, 2147483648
    %v600 = vsel %vm598, %v599, %v597
    %v601 = vrsqrt.pop %v430
    %v602 = vmul.f32 %v430, %v601
    %vm603 = vcmp.eq.f32.partialorder %v430, inf
    %v604 = vsel %vm603, %v430, %v602
    %vm605 = vcmp.eq.f32.partialorder %v430, 0.0
    %v606 = vand.u32 %v430, 2147483648
    %v607 = vsel %vm605, %v606, %v604
    %v608 = vrsqrt.pop %v431
    %v609 = vmul.f32 %v431, %v608
    %vm610 = vcmp.eq.f32.partialorder %v431, inf
    %v611 = vsel %vm610, %v431, %v609
    %vm612 = vcmp.eq.f32.partialorder %v431, 0.0
    %v613 = vand.u32 %v431, 2147483648
    %v614 = vsel %vm612, %v613, %v611
    %v615 = vrsqrt.pop %v432
    %v616 = vmul.f32 %v432, %v615
    %vm617 = vcmp.eq.f32.partialorder %v432, inf
    %v618 = vsel %vm617, %v432, %v616
    %vm619 = vcmp.eq.f32.partialorder %v432, 0.0
    %v620 = vand.u32 %v432, 2147483648
    %v621 = vsel %vm619, %v620, %v618
    %v622 = vrsqrt.pop %v433
    %v623 = vmul.f32 %v433, %v622
    %vm624 = vcmp.eq.f32.partialorder %v433, inf
    %v625 = vsel %vm624, %v433, %v623
    %vm626 = vcmp.eq.f32.partialorder %v433, 0.0
    %v627 = vand.u32 %v433, 2147483648
    %v628 = vsel %vm626, %v627, %v625
    %v629 = vrsqrt.pop %v434
    %v630 = vmul.f32 %v434, %v629
    %vm631 = vcmp.eq.f32.partialorder %v434, inf
    %v632 = vsel %vm631, %v434, %v630
    %vm633 = vcmp.eq.f32.partialorder %v434, 0.0
    %v634 = vand.u32 %v434, 2147483648
    %v635 = vsel %vm633, %v634, %v632
    %v636 = vrsqrt.pop %v435
    %v637 = vmul.f32 %v435, %v636
    %vm638 = vcmp.eq.f32.partialorder %v435, inf
    %v639 = vsel %vm638, %v435, %v637
    %vm640 = vcmp.eq.f32.partialorder %v435, 0.0
    %v641 = vand.u32 %v435, 2147483648
    %v642 = vsel %vm640, %v641, %v639
    %v643 = vrsqrt.pop %v436
    %v644 = vmul.f32 %v436, %v643
    %vm645 = vcmp.eq.f32.partialorder %v436, inf
    %v646 = vsel %vm645, %v436, %v644
    %vm647 = vcmp.eq.f32.partialorder %v436, 0.0
    %v648 = vand.u32 %v436, 2147483648
    %v649 = vsel %vm647, %v648, %v646
    %v650 = vrsqrt.pop %v437
    %v651 = vmul.f32 %v437, %v650
    %vm652 = vcmp.eq.f32.partialorder %v437, inf
    %v653 = vsel %vm652, %v437, %v651
    %vm654 = vcmp.eq.f32.partialorder %v437, 0.0
    %v655 = vand.u32 %v437, 2147483648
    %v656 = vsel %vm654, %v655, %v653
    %v657 = vrsqrt.pop %v438
    %v658 = vmul.f32 %v438, %v657
    %vm659 = vcmp.eq.f32.partialorder %v438, inf
    %v660 = vsel %vm659, %v438, %v658
    %vm661 = vcmp.eq.f32.partialorder %v438, 0.0
    %v662 = vand.u32 %v438, 2147483648
    %v663 = vsel %vm661, %v662, %v660
    %v664 = vrsqrt.pop %v439
    %v665 = vmul.f32 %v439, %v664
    %vm666 = vcmp.eq.f32.partialorder %v439, inf
    %v667 = vsel %vm666, %v439, %v665
    %vm668 = vcmp.eq.f32.partialorder %v439, 0.0
    %v669 = vand.u32 %v439, 2147483648
    %v670 = vsel %vm668, %v669, %v667
    %v671 = vstv %s73
    %v672 = vmul.f32 %v671, %v565
    %v673 = vmul.f32 %v671, %v572
    %v674 = vmul.f32 %v671, %v579
    %v675 = vmul.f32 %v671, %v586
    %v676 = vmul.f32 %v671, %v593
    %v677 = vmul.f32 %v671, %v600
    %v678 = vmul.f32 %v671, %v607
    %v679 = vmul.f32 %v671, %v614
    %v680 = vmul.f32 %v671, %v621
    %v681 = vmul.f32 %v671, %v628
    %v682 = vmul.f32 %v671, %v635
    %v683 = vmul.f32 %v671, %v642
    %v684 = vmul.f32 %v671, %v649
    %v685 = vmul.f32 %v671, %v656
    %v686 = vmul.f32 %v671, %v663
    %v687 = vmul.f32 %v671, %v670
    %v688 = vadd.f32 %v543, %v672
    %v689 = vadd.f32 %v544, %v673
    %v690 = vadd.f32 %v545, %v674
    %v691 = vadd.f32 %v546, %v675
    %v692 = vadd.f32 %v547, %v676
    %v693 = vadd.f32 %v548, %v677
    %v694 = vadd.f32 %v549, %v678
    %v695 = vadd.f32 %v550, %v679
    %v696 = vadd.f32 %v551, %v680
    %v697 = vadd.f32 %v552, %v681
    %v698 = vadd.f32 %v553, %v682
    %v699 = vadd.f32 %v554, %v683
    %v700 = vadd.f32 %v555, %v684
    %v701 = vadd.f32 %v556, %v685
    %v702 = vadd.f32 %v557, %v686
    %v703 = vadd.f32 %v558, %v687
    %v704 = vmin.f32 %v688, %v692
    %v705 = vmin.f32 %v689, %v693
    %v706 = vmin.f32 %v690, %v694
    %v707 = vmin.f32 %v691, %v695
    %v708 = vmin.f32 %v704, %v696
    %v709 = vmin.f32 %v705, %v697
    %v710 = vmin.f32 %v706, %v698
    %v711 = vmin.f32 %v707, %v699
    %v712 = vmin.f32 %v708, %v700
    %v713 = vmin.f32 %v709, %v701
    %v714 = vmin.f32 %v710, %v702
    %v715 = vmin.f32 %v711, %v703
    %v716 = vmin.f32 %v712, %v713
    %v717 = vmin.f32 %v714, %v715
    %v718 = vmin.f32 %v716, %v717
    %719 = vmin.xlane.f32.xlu0 %v718
    %v720 = vpop.xlane.xlu0 %719
    %v721 = vrot.slane %v720, 4
    %v722 = vmin.f32 %v720, %v721
    %v723 = vrot.slane %v722, 2
    %v724 = vmin.f32 %v722, %v723
    %v725 = vrot.slane %v724, 1
    %v726 = vmin.f32 %v724, %v725
    %s727 = vtos %v726
    %v728 = vmax.f32 %v688, %v692
    %v729 = vmax.f32 %v689, %v693
    %v730 = vmax.f32 %v690, %v694
    %v731 = vmax.f32 %v691, %v695
    %v732 = vmax.f32 %v728, %v696
    %v733 = vmax.f32 %v729, %v697
    %v734 = vmax.f32 %v730, %v698
    %v735 = vmax.f32 %v731, %v699
    %v736 = vmax.f32 %v732, %v700
    %v737 = vmax.f32 %v733, %v701
    %v738 = vmax.f32 %v734, %v702
    %v739 = vmax.f32 %v735, %v703
    %v740 = vmax.f32 %v736, %v737
    %v741 = vmax.f32 %v738, %v739
    %v742 = vmax.f32 %v740, %v741
    %743 = vmax.xlane.f32.xlu0 %v742
    %v744 = vpop.xlane.xlu0 %743
    %v745 = vrot.slane %v744, 4
    %v746 = vmax.f32 %v744, %v745
    %v747 = vrot.slane %v746, 2
    %v748 = vmax.f32 %v746, %v747
    %v749 = vrot.slane %v748, 1
    %v750 = vmax.f32 %v748, %v749
    %s751 = vtos %v750
    %s752 = ssub.f32 %s751, %s727
    %v753 = vstv %s752
    %v754 = vrcp.pop %v753
    %s755 = vtos %v754
    %v756 = vstv %s727
    %v757 = vsub.f32 %v688, %v756
    %v758 = vsub.f32 %v689, %v756
    %v759 = vsub.f32 %v690, %v756
    %v760 = vsub.f32 %v691, %v756
    %v761 = vsub.f32 %v692, %v756
    %v762 = vsub.f32 %v693, %v756
    %v763 = vsub.f32 %v694, %v756
    %v764 = vsub.f32 %v695, %v756
    %v765 = vsub.f32 %v696, %v756
    %v766 = vsub.f32 %v697, %v756
    %v767 = vsub.f32 %v698, %v756
    %v768 = vsub.f32 %v699, %v756
    %v769 = vsub.f32 %v700, %v756
    %v770 = vsub.f32 %v701, %v756
    %v771 = vsub.f32 %v702, %v756
    %v772 = vsub.f32 %v703, %v756
    %v773 = vstv %s755
    %v774 = vmul.f32 %v757, %v773
    %v775 = vmul.f32 %v758, %v773
    %v776 = vmul.f32 %v759, %v773
    %v777 = vmul.f32 %v760, %v773
    %v778 = vmul.f32 %v761, %v773
    %v779 = vmul.f32 %v762, %v773
    %v780 = vmul.f32 %v763, %v773
    %v781 = vmul.f32 %v764, %v773
    %v782 = vmul.f32 %v765, %v773
    %v783 = vmul.f32 %v766, %v773
    %v784 = vmul.f32 %v767, %v773
    %v785 = vmul.f32 %v768, %v773
    %v786 = vmul.f32 %v769, %v773
    %v787 = vmul.f32 %v770, %v773
    %v788 = vmul.f32 %v771, %v773
    %v789 = vmul.f32 %v772, %v773
    %s790 = sld [smem:[#allocation3]]
    %v791 = vstv %s790
    %v792 = vsub.f32 %v774, %v791
    %v793 = vsub.f32 %v775, %v791
    %v794 = vsub.f32 %v776, %v791
    %v795 = vsub.f32 %v777, %v791
    %v796 = vsub.f32 %v778, %v791
    %v797 = vsub.f32 %v779, %v791
    %v798 = vsub.f32 %v780, %v791
    %v799 = vsub.f32 %v781, %v791
    %v800 = vsub.f32 %v782, %v791
    %v801 = vsub.f32 %v783, %v791
    %v802 = vsub.f32 %v784, %v791
    %v803 = vsub.f32 %v785, %v791
    %v804 = vsub.f32 %v786, %v791
    %v805 = vsub.f32 %v787, %v791
    %v806 = vsub.f32 %v788, %v791
    %v807 = vsub.f32 %v789, %v791
    %s808 = sld [smem:[#allocation6]]
    %s809 = sld [smem:[#allocation8]]
    %v810 = vmul.f32 %v792, %v792
    %v811 = vmul.f32 %v793, %v793
    %v812 = vmul.f32 %v794, %v794
    %v813 = vmul.f32 %v795, %v795
    %v814 = vmul.f32 %v796, %v796
    %v815 = vmul.f32 %v797, %v797
    %v816 = vmul.f32 %v798, %v798
    %v817 = vmul.f32 %v799, %v799
    %v818 = vmul.f32 %v800, %v800
    %v819 = vmul.f32 %v801, %v801
    %v820 = vmul.f32 %v802, %v802
    %v821 = vmul.f32 %v803, %v803
    %v822 = vmul.f32 %v804, %v804
    %v823 = vmul.f32 %v805, %v805
    %v824 = vmul.f32 %v806, %v806
    %v825 = vmul.f32 %v807, %v807
    %v826 = vstv %s809
    %v827 = vmul.f32 %v826, %v810
    %v828 = vmul.f32 %v826, %v811
    %v829 = vmul.f32 %v826, %v812
    %v830 = vmul.f32 %v826, %v813
    %v831 = vmul.f32 %v826, %v814
    %v832 = vmul.f32 %v826, %v815
    %v833 = vmul.f32 %v826, %v816
    %v834 = vmul.f32 %v826, %v817
    %v835 = vmul.f32 %v826, %v818
    %v836 = vmul.f32 %v826, %v819
    %v837 = vmul.f32 %v826, %v820
    %v838 = vmul.f32 %v826, %v821
    %v839 = vmul.f32 %v826, %v822
    %v840 = vmul.f32 %v826, %v823
    %v841 = vmul.f32 %v826, %v824
    %v842 = vmul.f32 %v826, %v825
    %v843 = vmul.f32 %v827, 1.442695
    %v844 = vpow.pop %v843
    %v845 = vmul.f32 %v828, 1.442695
    %v846 = vpow.pop %v845
    %v847 = vmul.f32 %v829, 1.442695
    %v848 = vpow.pop %v847
    %v849 = vmul.f32 %v830, 1.442695
    %v850 = vpow.pop %v849
    %v851 = vmul.f32 %v831, 1.442695
    %v852 = vpow.pop %v851
    %v853 = vmul.f32 %v832, 1.442695
    %v854 = vpow.pop %v853
    %v855 = vmul.f32 %v833, 1.442695
    %v856 = vpow.pop %v855
    %v857 = vmul.f32 %v834, 1.442695
    %v858 = vpow.pop %v857
    %v859 = vmul.f32 %v835, 1.442695
    %v860 = vpow.pop %v859
    %v861 = vmul.f32 %v836, 1.442695
    %v862 = vpow.pop %v861
    %v863 = vmul.f32 %v837, 1.442695
    %v864 = vpow.pop %v863
    %v865 = vmul.f32 %v838, 1.442695
    %v866 = vpow.pop %v865
    %v867 = vmul.f32 %v839, 1.442695
    %v868 = vpow.pop %v867
    %v869 = vmul.f32 %v840, 1.442695
    %v870 = vpow.pop %v869
    %v871 = vmul.f32 %v841, 1.442695
    %v872 = vpow.pop %v871
    %v873 = vmul.f32 %v842, 1.442695
    %v874 = vpow.pop %v873
    %v875 = vstv %s808
    %v876 = vmul.f32 %v875, %v844
    %v877 = vmul.f32 %v875, %v846
    %v878 = vmul.f32 %v875, %v848
    %v879 = vmul.f32 %v875, %v850
    %v880 = vmul.f32 %v875, %v852
    %v881 = vmul.f32 %v875, %v854
    %v882 = vmul.f32 %v875, %v856
    %v883 = vmul.f32 %v875, %v858
    %v884 = vmul.f32 %v875, %v860
    %v885 = vmul.f32 %v875, %v862
    %v886 = vmul.f32 %v875, %v864
    %v887 = vmul.f32 %v875, %v866
    %v888 = vmul.f32 %v875, %v868
    %v889 = vmul.f32 %v875, %v870
    %v890 = vmul.f32 %v875, %v872
    %v891 = vmul.f32 %v875, %v874
    %v892 = vadd.f32 %v876, 0.0
    %v893 = vadd.f32 %v877, 0.0
    %v894 = vadd.f32 %v878, 0.0
    %v895 = vadd.f32 %v879, 0.0
    %v896 = vadd.f32 %v880, 0.0
    %v897 = vadd.f32 %v881, 0.0
    %v898 = vadd.f32 %v882, 0.0
    %v899 = vadd.f32 %v883, 0.0
    %v900 = vadd.f32 %v884, 0.0
    %v901 = vadd.f32 %v885, 0.0
    %v902 = vadd.f32 %v886, 0.0
    %v903 = vadd.f32 %v887, 0.0
    %v904 = vadd.f32 %v888, 0.0
    %v905 = vadd.f32 %v889, 0.0
    %v906 = vadd.f32 %v890, 0.0
    %v907 = vadd.f32 %v891, 0.0
    %s908 = sld [smem:[#allocation3 + $0x1]]
    %v909 = vstv %s908
    %v910 = vsub.f32 %v774, %v909
    %v911 = vsub.f32 %v775, %v909
    %v912 = vsub.f32 %v776, %v909
    %v913 = vsub.f32 %v777, %v909
    %v914 = vsub.f32 %v778, %v909
    %v915 = vsub.f32 %v779, %v909
    %v916 = vsub.f32 %v780, %v909
    %v917 = vsub.f32 %v781, %v909
    %v918 = vsub.f32 %v782, %v909
    %v919 = vsub.f32 %v783, %v909
    %v920 = vsub.f32 %v784, %v909
    %v921 = vsub.f32 %v785, %v909
    %v922 = vsub.f32 %v786, %v909
    %v923 = vsub.f32 %v787, %v909
    %v924 = vsub.f32 %v788, %v909
    %v925 = vsub.f32 %v789, %v909
    %s926 = sld [smem:[#allocation6 + $0x1]]
    %s927 = sld [smem:[#allocation8 + $0x1]]
    %v928 = vmul.f32 %v910, %v910
    %v929 = vmul.f32 %v911, %v911
    %v930 = vmul.f32 %v912, %v912
    %v931 = vmul.f32 %v913, %v913
    %v932 = vmul.f32 %v914, %v914
    %v933 = vmul.f32 %v915, %v915
    %v934 = vmul.f32 %v916, %v916
    %v935 = vmul.f32 %v917, %v917
    %v936 = vmul.f32 %v918, %v918
    %v937 = vmul.f32 %v919, %v919
    %v938 = vmul.f32 %v920, %v920
    %v939 = vmul.f32 %v921, %v921
    %v940 = vmul.f32 %v922, %v922
    %v941 = vmul.f32 %v923, %v923
    %v942 = vmul.f32 %v924, %v924
    %v943 = vmul.f32 %v925, %v925
    %v944 = vstv %s927
    %v945 = vmul.f32 %v944, %v928
    %v946 = vmul.f32 %v944, %v929
    %v947 = vmul.f32 %v944, %v930
    %v948 = vmul.f32 %v944, %v931
    %v949 = vmul.f32 %v944, %v932
    %v950 = vmul.f32 %v944, %v933
    %v951 = vmul.f32 %v944, %v934
    %v952 = vmul.f32 %v944, %v935
    %v953 = vmul.f32 %v944, %v936
    %v954 = vmul.f32 %v944, %v937
    %v955 = vmul.f32 %v944, %v938
    %v956 = vmul.f32 %v944, %v939
    %v957 = vmul.f32 %v944, %v940
    %v958 = vmul.f32 %v944, %v941
    %v959 = vmul.f32 %v944, %v942
    %v960 = vmul.f32 %v944, %v943
    %v961 = vmul.f32 %v945, 1.442695
    %v962 = vpow.pop %v961
    %v963 = vmul.f32 %v946, 1.442695
    %v964 = vpow.pop %v963
    %v965 = vmul.f32 %v947, 1.442695
    %v966 = vpow.pop %v965
    %v967 = vmul.f32 %v948, 1.442695
    %v968 = vpow.pop %v967
    %v969 = vmul.f32 %v949, 1.442695
    %v970 = vpow.pop %v969
    %v971 = vmul.f32 %v950, 1.442695
    %v972 = vpow.pop %v971
    %v973 = vmul.f32 %v951, 1.442695
    %v974 = vpow.pop %v973
    %v975 = vmul.f32 %v952, 1.442695
    %v976 = vpow.pop %v975
    %v977 = vmul.f32 %v953, 1.442695
    %v978 = vpow.pop %v977
    %v979 = vmul.f32 %v954, 1.442695
    %v980 = vpow.pop %v979
    %v981 = vmul.f32 %v955, 1.442695
    %v982 = vpow.pop %v981
    %v983 = vmul.f32 %v956, 1.442695
    %v984 = vpow.pop %v983
    %v985 = vmul.f32 %v957, 1.442695
    %v986 = vpow.pop %v985
    %v987 = vmul.f32 %v958, 1.442695
    %v988 = vpow.pop %v987
    %v989 = vmul.f32 %v959, 1.442695
    %v990 = vpow.pop %v989
    %v991 = vmul.f32 %v960, 1.442695
    %v992 = vpow.pop %v991
    %v993 = vstv %s926
    %v994 = vmul.f32 %v993, %v962
    %v995 = vmul.f32 %v993, %v964
    %v996 = vmul.f32 %v993, %v966
    %v997 = vmul.f32 %v993, %v968
    %v998 = vmul.f32 %v993, %v970
    %v999 = vmul.f32 %v993, %v972
    %v1000 = vmul.f32 %v993, %v974
    %v1001 = vmul.f32 %v993, %v976
    %v1002 = vmul.f32 %v993, %v978
    %v1003 = vmul.f32 %v993, %v980
    %v1004 = vmul.f32 %v993, %v982
    %v1005 = vmul.f32 %v993, %v984
    %v1006 = vmul.f32 %v993, %v986
    %v1007 = vmul.f32 %v993, %v988
    %v1008 = vmul.f32 %v993, %v990
    %v1009 = vmul.f32 %v993, %v992
    %v1010 = vadd.f32 %v892, %v994
    %v1011 = vadd.f32 %v893, %v995
    %v1012 = vadd.f32 %v894, %v996
    %v1013 = vadd.f32 %v895, %v997
    %v1014 = vadd.f32 %v896, %v998
    %v1015 = vadd.f32 %v897, %v999
    %v1016 = vadd.f32 %v898, %v1000
    %v1017 = vadd.f32 %v899, %v1001
    %v1018 = vadd.f32 %v900, %v1002
    %v1019 = vadd.f32 %v901, %v1003
    %v1020 = vadd.f32 %v902, %v1004
    %v1021 = vadd.f32 %v903, %v1005
    %v1022 = vadd.f32 %v904, %v1006
    %v1023 = vadd.f32 %v905, %v1007
    %v1024 = vadd.f32 %v906, %v1008
    %v1025 = vadd.f32 %v907, %v1009
    %s1026 = sld [smem:[#allocation3 + $0x2]]
    %v1027 = vstv %s1026
    %v1028 = vsub.f32 %v774, %v1027
    %v1029 = vsub.f32 %v775, %v1027
    %v1030 = vsub.f32 %v776, %v1027
    %v1031 = vsub.f32 %v777, %v1027
    %v1032 = vsub.f32 %v778, %v1027
    %v1033 = vsub.f32 %v779, %v1027
    %v1034 = vsub.f32 %v780, %v1027
    %v1035 = vsub.f32 %v781, %v1027
    %v1036 = vsub.f32 %v782, %v1027
    %v1037 = vsub.f32 %v783, %v1027
    %v1038 = vsub.f32 %v784, %v1027
    %v1039 = vsub.f32 %v785, %v1027
    %v1040 = vsub.f32 %v786, %v1027
    %v1041 = vsub.f32 %v787, %v1027
    %v1042 = vsub.f32 %v788, %v1027
    %v1043 = vsub.f32 %v789, %v1027
    %s1044 = sld [smem:[#allocation6 + $0x2]]
    %s1045 = sld [smem:[#allocation8 + $0x2]]
    %v1046 = vmul.f32 %v1028, %v1028
    %v1047 = vmul.f32 %v1029, %v1029
    %v1048 = vmul.f32 %v1030, %v1030
    %v1049 = vmul.f32 %v1031, %v1031
    %v1050 = vmul.f32 %v1032, %v1032
    %v1051 = vmul.f32 %v1033, %v1033
    %v1052 = vmul.f32 %v1034, %v1034
    %v1053 = vmul.f32 %v1035, %v1035
    %v1054 = vmul.f32 %v1036, %v1036
    %v1055 = vmul.f32 %v1037, %v1037
    %v1056 = vmul.f32 %v1038, %v1038
    %v1057 = vmul.f32 %v1039, %v1039
    %v1058 = vmul.f32 %v1040, %v1040
    %v1059 = vmul.f32 %v1041, %v1041
    %v1060 = vmul.f32 %v1042, %v1042
    %v1061 = vmul.f32 %v1043, %v1043
    %v1062 = vstv %s1045
    %v1063 = vmul.f32 %v1062, %v1046
    %v1064 = vmul.f32 %v1062, %v1047
    %v1065 = vmul.f32 %v1062, %v1048
    %v1066 = vmul.f32 %v1062, %v1049
    %v1067 = vmul.f32 %v1062, %v1050
    %v1068 = vmul.f32 %v1062, %v1051
    %v1069 = vmul.f32 %v1062, %v1052
    %v1070 = vmul.f32 %v1062, %v1053
    %v1071 = vmul.f32 %v1062, %v1054
    %v1072 = vmul.f32 %v1062, %v1055
    %v1073 = vmul.f32 %v1062, %v1056
    %v1074 = vmul.f32 %v1062, %v1057
    %v1075 = vmul.f32 %v1062, %v1058
    %v1076 = vmul.f32 %v1062, %v1059
    %v1077 = vmul.f32 %v1062, %v1060
    %v1078 = vmul.f32 %v1062, %v1061
    %v1079 = vmul.f32 %v1063, 1.442695
    %v1080 = vpow.pop %v1079
    %v1081 = vmul.f32 %v1064, 1.442695
    %v1082 = vpow.pop %v1081
    %v1083 = vmul.f32 %v1065, 1.442695
    %v1084 = vpow.pop %v1083
    %v1085 = vmul.f32 %v1066, 1.442695
    %v1086 = vpow.pop %v1085
    %v1087 = vmul.f32 %v1067, 1.442695
    %v1088 = vpow.pop %v1087
    %v1089 = vmul.f32 %v1068, 1.442695
    %v1090 = vpow.pop %v1089
    %v1091 = vmul.f32 %v1069, 1.442695
    %v1092 = vpow.pop %v1091
    %v1093 = vmul.f32 %v1070, 1.442695
    %v1094 = vpow.pop %v1093
    %v1095 = vmul.f32 %v1071, 1.442695
    %v1096 = vpow.pop %v1095
    %v1097 = vmul.f32 %v1072, 1.442695
    %v1098 = vpow.pop %v1097
    %v1099 = vmul.f32 %v1073, 1.442695
    %v1100 = vpow.pop %v1099
    %v1101 = vmul.f32 %v1074, 1.442695
    %v1102 = vpow.pop %v1101
    %v1103 = vmul.f32 %v1075, 1.442695
    %v1104 = vpow.pop %v1103
    %v1105 = vmul.f32 %v1076, 1.442695
    %v1106 = vpow.pop %v1105
    %v1107 = vmul.f32 %v1077, 1.442695
    %v1108 = vpow.pop %v1107
    %v1109 = vmul.f32 %v1078, 1.442695
    %v1110 = vpow.pop %v1109
    %v1111 = vstv %s1044
    %v1112 = vmul.f32 %v1111, %v1080
    %v1113 = vmul.f32 %v1111, %v1082
    %v1114 = vmul.f32 %v1111, %v1084
    %v1115 = vmul.f32 %v1111, %v1086
    %v1116 = vmul.f32 %v1111, %v1088
    %v1117 = vmul.f32 %v1111, %v1090
    %v1118 = vmul.f32 %v1111, %v1092
    %v1119 = vmul.f32 %v1111, %v1094
    %v1120 = vmul.f32 %v1111, %v1096
    %v1121 = vmul.f32 %v1111, %v1098
    %v1122 = vmul.f32 %v1111, %v1100
    %v1123 = vmul.f32 %v1111, %v1102
    %v1124 = vmul.f32 %v1111, %v1104
    %v1125 = vmul.f32 %v1111, %v1106
    %v1126 = vmul.f32 %v1111, %v1108
    %v1127 = vmul.f32 %v1111, %v1110
    %v1128 = vadd.f32 %v1010, %v1112
    %v1129 = vadd.f32 %v1011, %v1113
    %v1130 = vadd.f32 %v1012, %v1114
    %v1131 = vadd.f32 %v1013, %v1115
    %v1132 = vadd.f32 %v1014, %v1116
    %v1133 = vadd.f32 %v1015, %v1117
    %v1134 = vadd.f32 %v1016, %v1118
    %v1135 = vadd.f32 %v1017, %v1119
    %v1136 = vadd.f32 %v1018, %v1120
    %v1137 = vadd.f32 %v1019, %v1121
    %v1138 = vadd.f32 %v1020, %v1122
    %v1139 = vadd.f32 %v1021, %v1123
    %v1140 = vadd.f32 %v1022, %v1124
    %v1141 = vadd.f32 %v1023, %v1125
    %v1142 = vadd.f32 %v1024, %v1126
    %v1143 = vadd.f32 %v1025, %v1127
    %s1144 = sld [smem:[#allocation3 + $0x3]]
    %v1145 = vstv %s1144
    %v1146 = vsub.f32 %v774, %v1145
    %v1147 = vsub.f32 %v775, %v1145
    %v1148 = vsub.f32 %v776, %v1145
    %v1149 = vsub.f32 %v777, %v1145
    %v1150 = vsub.f32 %v778, %v1145
    %v1151 = vsub.f32 %v779, %v1145
    %v1152 = vsub.f32 %v780, %v1145
    %v1153 = vsub.f32 %v781, %v1145
    %v1154 = vsub.f32 %v782, %v1145
    %v1155 = vsub.f32 %v783, %v1145
    %v1156 = vsub.f32 %v784, %v1145
    %v1157 = vsub.f32 %v785, %v1145
    %v1158 = vsub.f32 %v786, %v1145
    %v1159 = vsub.f32 %v787, %v1145
    %v1160 = vsub.f32 %v788, %v1145
    %v1161 = vsub.f32 %v789, %v1145
    %s1162 = sld [smem:[#allocation6 + $0x3]]
    %s1163 = sld [smem:[#allocation8 + $0x3]]
    %v1164 = vmul.f32 %v1146, %v1146
    %v1165 = vmul.f32 %v1147, %v1147
    %v1166 = vmul.f32 %v1148, %v1148
    %v1167 = vmul.f32 %v1149, %v1149
    %v1168 = vmul.f32 %v1150, %v1150
    %v1169 = vmul.f32 %v1151, %v1151
    %v1170 = vmul.f32 %v1152, %v1152
    %v1171 = vmul.f32 %v1153, %v1153
    %v1172 = vmul.f32 %v1154, %v1154
    %v1173 = vmul.f32 %v1155, %v1155
    %v1174 = vmul.f32 %v1156, %v1156
    %v1175 = vmul.f32 %v1157, %v1157
    %v1176 = vmul.f32 %v1158, %v1158
    %v1177 = vmul.f32 %v1159, %v1159
    %v1178 = vmul.f32 %v1160, %v1160
    %v1179 = vmul.f32 %v1161, %v1161
    %v1180 = vstv %s1163
    %v1181 = vmul.f32 %v1180, %v1164
    %v1182 = vmul.f32 %v1180, %v1165
    %v1183 = vmul.f32 %v1180, %v1166
    %v1184 = vmul.f32 %v1180, %v1167
    %v1185 = vmul.f32 %v1180, %v1168
    %v1186 = vmul.f32 %v1180, %v1169
    %v1187 = vmul.f32 %v1180, %v1170
    %v1188 = vmul.f32 %v1180, %v1171
    %v1189 = vmul.f32 %v1180, %v1172
    %v1190 = vmul.f32 %v1180, %v1173
    %v1191 = vmul.f32 %v1180, %v1174
    %v1192 = vmul.f32 %v1180, %v1175
    %v1193 = vmul.f32 %v1180, %v1176
    %v1194 = vmul.f32 %v1180, %v1177
    %v1195 = vmul.f32 %v1180, %v1178
    %v1196 = vmul.f32 %v1180, %v1179
    %v1197 = vmul.f32 %v1181, 1.442695
    %v1198 = vpow.pop %v1197
    %v1199 = vmul.f32 %v1182, 1.442695
    %v1200 = vpow.pop %v1199
    %v1201 = vmul.f32 %v1183, 1.442695
    %v1202 = vpow.pop %v1201
    %v1203 = vmul.f32 %v1184, 1.442695
    %v1204 = vpow.pop %v1203
    %v1205 = vmul.f32 %v1185, 1.442695
    %v1206 = vpow.pop %v1205
    %v1207 = vmul.f32 %v1186, 1.442695
    %v1208 = vpow.pop %v1207
    %v1209 = vmul.f32 %v1187, 1.442695
    %v1210 = vpow.pop %v1209
    %v1211 = vmul.f32 %v1188, 1.442695
    %v1212 = vpow.pop %v1211
    %v1213 = vmul.f32 %v1189, 1.442695
    %v1214 = vpow.pop %v1213
    %v1215 = vmul.f32 %v1190, 1.442695
    %v1216 = vpow.pop %v1215
    %v1217 = vmul.f32 %v1191, 1.442695
    %v1218 = vpow.pop %v1217
    %v1219 = vmul.f32 %v1192, 1.442695
    %v1220 = vpow.pop %v1219
    %v1221 = vmul.f32 %v1193, 1.442695
    %v1222 = vpow.pop %v1221
    %v1223 = vmul.f32 %v1194, 1.442695
    %v1224 = vpow.pop %v1223
    %v1225 = vmul.f32 %v1195, 1.442695
    %v1226 = vpow.pop %v1225
    %v1227 = vmul.f32 %v1196, 1.442695
    %v1228 = vpow.pop %v1227
    %v1229 = vstv %s1162
    %v1230 = vmul.f32 %v1229, %v1198
    %v1231 = vmul.f32 %v1229, %v1200
    %v1232 = vmul.f32 %v1229, %v1202
    %v1233 = vmul.f32 %v1229, %v1204
    %v1234 = vmul.f32 %v1229, %v1206
    %v1235 = vmul.f32 %v1229, %v1208
    %v1236 = vmul.f32 %v1229, %v1210
    %v1237 = vmul.f32 %v1229, %v1212
    %v1238 = vmul.f32 %v1229, %v1214
    %v1239 = vmul.f32 %v1229, %v1216
    %v1240 = vmul.f32 %v1229, %v1218
    %v1241 = vmul.f32 %v1229, %v1220
    %v1242 = vmul.f32 %v1229, %v1222
    %v1243 = vmul.f32 %v1229, %v1224
    %v1244 = vmul.f32 %v1229, %v1226
    %v1245 = vmul.f32 %v1229, %v1228
    %v1246 = vadd.f32 %v1128, %v1230
    %v1247 = vadd.f32 %v1129, %v1231
    %v1248 = vadd.f32 %v1130, %v1232
    %v1249 = vadd.f32 %v1131, %v1233
    %v1250 = vadd.f32 %v1132, %v1234
    %v1251 = vadd.f32 %v1133, %v1235
    %v1252 = vadd.f32 %v1134, %v1236
    %v1253 = vadd.f32 %v1135, %v1237
    %v1254 = vadd.f32 %v1136, %v1238
    %v1255 = vadd.f32 %v1137, %v1239
    %v1256 = vadd.f32 %v1138, %v1240
    %v1257 = vadd.f32 %v1139, %v1241
    %v1258 = vadd.f32 %v1140, %v1242
    %v1259 = vadd.f32 %v1141, %v1243
    %v1260 = vadd.f32 %v1142, %v1244
    %v1261 = vadd.f32 %v1143, %v1245
    %1262 = vst [vmem:[#allocation9] sm:$0xff] %v1246
    %1263 = vst [vmem:[#allocation9 + $0x8] sm:$0xff] %v1247
    %1264 = vst [vmem:[#allocation9 + $0x10] sm:$0xff] %v1248
    %1265 = vst [vmem:[#allocation9 + $0x18] sm:$0xff] %v1249
    %1266 = vst [vmem:[#allocation9 + $0x20] sm:$0xff] %v1250
    %1267 = vst [vmem:[#allocation9 + $0x28] sm:$0xff] %v1251
    %1268 = vst [vmem:[#allocation9 + $0x30] sm:$0xff] %v1252
    %1269 = vst [vmem:[#allocation9 + $0x38] sm:$0xff] %v1253
    %1270 = vst [vmem:[#allocation9 + $0x40] sm:$0xff] %v1254
    %1271 = vst [vmem:[#allocation9 + $0x48] sm:$0xff] %v1255
    %1272 = vst [vmem:[#allocation9 + $0x50] sm:$0xff] %v1256
    %1273 = vst [vmem:[#allocation9 + $0x58] sm:$0xff] %v1257
    %1274 = vst [vmem:[#allocation9 + $0x60] sm:$0xff] %v1258
    %1275 = vst [vmem:[#allocation9 + $0x68] sm:$0xff] %v1259
    %1276 = vst [vmem:[#allocation9 + $0x70] sm:$0xff] %v1260
    %1277 = vst [vmem:[#allocation9 + $0x78] sm:$0xff] %v1261
    // Predicated region
    $region54: #{tpu_custom_call.1} parent=1 // pred_check
      _
    $region55: #{tpu_custom_call.1} parent=1 // pred_check_branch
      %1279 = sbr.rel (0) target = $region57
    $region56: #{tpu_custom_call.1} parent=1 // pred_region
      %s1281 = ssub.s32 2048, 2048
      %1282 = vsyncadd [#allocation4], %s1281
      %s1283 = sshll.u32 [#allocation9], 4
      %s1284 = int_to_ptr.vmem [resolvable:$true] %s1283
      %1289 = dma.vmem_to_hbm [thread:$0]  %s1284, 2048, %s10, [#allocation4], 128, 128, 8
    $region57: #{tpu_custom_call.1} parent=1 // pred_fallthru
      _
    // Predicated region
    $region58: #{tpu_custom_call.1} parent=1 // pred_check
      _
    $region59: #{tpu_custom_call.1} parent=1 // pred_check_branch
      %1291 = sbr.rel (0) target = $region61
    $region60: #{tpu_custom_call.1} parent=1 // pred_region
      %1292 = dma.done [#allocation4], 2048
    $region61: #{tpu_custom_call.1} parent=1 // pred_fallthru
      _
    %1293 = vsyncpa [#allocation4], 1
    %1294 = vsyncpa [#allocation5], 1
    %1295 = vsyncpa [#allocation7], 1

</llo_original>
